<compile_context>
chip_gen: v5e
topology: v5e:2x2
jax: 0.10.0
libtpu: 0.0.40
codegen_flags: <defaults>
</compile_context>

<pallas_src>
import functools

import jax
import jax.numpy as jnp
from jax import lax
from jax.experimental import pallas as pl
from jax.experimental.pallas import tpu as pltpu

_LANE = 128
_MAX_LANE_TILE = 512                    # cross-generation-safe lane-tile cap
_VMEM_BLOCK_BUDGET = 6 * 1024 * 1024    # double-buffered in+out block budget


def _detection_kernel(x_ref, o_ref, *, stride, grid_size, hw_tile, ba_chunk,
                      anchors):
    """x/o blocks: (ba_chunk, n_attrs, hw_tile)."""
    i = pl.program_id(0)                      # B*A chunk index
    j = pl.program_id(1)                      # HW lane-tile index

    xf = x_ref[...].astype(jnp.float32)       # single full-block load
    shape = xf.shape
    row = lax.broadcasted_iota(jnp.int32, shape, 1)

    # Grid-cell offsets from the global lane index, float-reciprocal form.
    # (+0.5 guards floor() against f32 rounding exactly at multiples of G.)
    lane = lax.broadcasted_iota(jnp.int32, shape, 2) + j * hw_tile
    lane = lane.astype(jnp.float32)
    cy = jnp.floor((lane + 0.5) * (1.0 / grid_size))
    cx = lane - cy * grid_size
    off = jnp.where(row == 0, cx, cy)         # only rows 0/1 are consumed

    # Per-(batch*anchor) anchor (w, h) built in-kernel from static Python
    # floats: 2-D iotas + splat-constant selects (no DMA, no dense constants).
    shape2 = (shape[0], shape[1])
    ba_f = (lax.broadcasted_iota(jnp.int32, shape2, 0) + i * ba_chunk)
    ba_f = ba_f.astype(jnp.float32)
    num_anchors = float(len(anchors))
    q = jnp.floor((ba_f + 0.5) * (1.0 / num_anchors))
    a_idx = ba_f - q * num_anchors            # exact small ints in [0, A)
    row2 = lax.broadcasted_iota(jnp.int32, shape2, 1)
    anc2 = jnp.zeros(shape2, jnp.float32)
    for a, (w, h) in enumerate(anchors):
        sel = a_idx == jnp.float32(a)
        anc2 = jnp.where(sel & (row2 == 2), jnp.float32(w), anc2)
        anc2 = jnp.where(sel & (row2 == 3), jnp.float32(h), anc2)
    anc = anc2[:, :, None]                    # (ba_chunk, n_attrs, 1)

    sig = jax.nn.sigmoid(xf)
    box_xy = (sig + off) * stride             # valid for rows 0:2
    box_wh = jnp.exp(xf) * anc                # valid for rows 2:4 (exp on the
                                              # other rows is selected away;
                                              # EUP slack is free here)
    val = jnp.where(row < 2, box_xy, jnp.where(row < 4, box_wh, sig))
    o_ref[...] = val.astype(o_ref.dtype)      # single unmasked full-block store


def detection_layer(x, anchors, inp_dim, num_classes, *,
                    native_layout=True, out_dtype=jnp.float32):
    """YOLOv3 detection transform.

    x: (B, A*(5+num_classes), G, G), channels packed anchor-major /
    attribute-minor (standard darknet layout).

    Returns the kernel-native (B*A, 5+num_classes, G*G) predictions by default
    (no extra HBM pass).  Pass native_layout=False for the standard darknet
    (B, G*G*A, 5+num_classes) layout (a separate XLA transpose pass).
    """
    B, C, G, G_ = x.shape
    assert G == G_
    anchors = tuple((float(w), float(h)) for (w, h) in anchors)
    A = len(anchors)
    n_attrs = 5 + num_classes
    assert n_attrs >= 5
    assert C == A * n_attrs, "channels must be packed as A * (5 + num_classes)"
    stride = float(inp_dim) / float(G)
    HW = G * G
    BA = B * A

    # Metadata-only reshape (no copy, no dtype change): NCHW -> (B*A, attrs, HW).
    x_r = x.reshape(BA, n_attrs, HW)

    # Split B*A into two balanced "parallel" chunks so both v7x TensorCores
    # get work even when the HW axis has only one or two tiles (harmless on
    # single-TC v5e/v6e).
    ba_chunks = 2 if BA >= 2 else 1
    ba_chunk = pl.cdiv(BA, ba_chunks)
    ba_chunks = pl.cdiv(BA, ba_chunk)

    # Lane tile from a VMEM byte budget: double-buffered (in + out) blocks.
    in_bpe = x.dtype.itemsize
    out_bpe = jnp.dtype(out_dtype).itemsize
    n_attrs_pad = pl.cdiv(n_attrs, 8) * 8
    per_lane_bytes = 2 * (in_bpe + out_bpe) * ba_chunk * n_attrs_pad
    if HW <= _LANE:
        hw_tile = HW            # full spatial dim (allowed even if < 128)
    else:
        hw_tile = (_VMEM_BLOCK_BUDGET // per_lane_bytes) // _LANE * _LANE
        hw_tile = int(min(max(_LANE, hw_tile), _MAX_LANE_TILE,
                          (HW // _LANE) * _LANE))

    grid = (ba_chunks, pl.cdiv(HW, hw_tile))

    out = pl.pallas_call(
        functools.partial(_detection_kernel, stride=stride, grid_size=G,
                          hw_tile=hw_tile, ba_chunk=ba_chunk, anchors=anchors),
        out_shape=jax.ShapeDtypeStruct((BA, n_attrs, HW), out_dtype),
        grid=grid,
        in_specs=[pl.BlockSpec((ba_chunk, n_attrs, hw_tile),
                               lambda i, j: (i, 0, j))],
        out_specs=pl.BlockSpec((ba_chunk, n_attrs, hw_tile),
                               lambda i, j: (i, 0, j)),
        compiler_params=pltpu.CompilerParams(
            dimension_semantics=("parallel", "parallel"),
            vmem_limit_bytes=32 * 1024 * 1024),
    )(x_r)

    if native_layout:
        return out              # (B*A, n_attrs, HW), no trailing padding

    # Standard predict_transform layout (anchor varies fastest per grid cell).
    # TODO(synk): this transpose is a separate XLA HBM pass; consumers that can
    #             accept the native layout should keep native_layout=True.
    out = out.reshape(B, A, n_attrs, HW).transpose(0, 3, 1, 2)
    return out.reshape(B, HW * A, n_attrs)


def _reference(x, anchors, inp_dim, num_classes):
    """Pure-JAX predict_transform reference for the correctness check."""
    B, C, G, _ = x.shape
    A = len(anchors)
    n_attrs = 5 + num_classes
    stride = float(inp_dim) / float(G)
    HW = G * G
    pred = x.astype(jnp.float32).reshape(B, A * n_attrs, HW)
    pred = jnp.transpose(pred, (0, 2, 1)).reshape(B, HW * A, n_attrs)

    idx = jnp.arange(HW)
    xo = jnp.repeat((idx % G).astype(jnp.float32), A)
    yo = jnp.repeat((idx // G).astype(jnp.float32), A)
    anc = jnp.tile(jnp.asarray(anchors, jnp.float32), (HW, 1))

    bx = (jax.nn.sigmoid(pred[..., 0]) + xo) * stride
    by = (jax.nn.sigmoid(pred[..., 1]) + yo) * stride
    bw = jnp.exp(pred[..., 2]) * anc[:, 0]
    bh = jnp.exp(pred[..., 3]) * anc[:, 1]
    rest = jax.nn.sigmoid(pred[..., 4:])
    return jnp.concatenate(
        [jnp.stack([bx, by, bw, bh], axis=-1), rest], axis=-1)


if __name__ == "__main__":
    key = jax.random.PRNGKey(0)
    anchors = [(10.0, 13.0), (16.0, 30.0), (33.0, 23.0)]
    A = len(anchors)
    num_classes = 3
    n_attrs = 5 + num_classes
    k1, k2 = jax.random.split(key)

    # Config 1: lane-dense grid (G=16 -> HW=256), f32, both output layouts.
    B, G, inp_dim = 2, 16, 128
    x = jax.random.normal(k1, (B, A * n_attrs, G, G), dtype=jnp.float32)
    out_std = detection_layer(x, anchors, inp_dim, num_classes,
                              native_layout=False)
    out_nat = detection_layer(x, anchors, inp_dim, num_classes)  # native default
    out_std, out_nat = jax.block_until_ready((out_std, out_nat))

    HW = G * G
    ref = _reference(x, anchors, inp_dim, num_classes)
    ref_nat = (ref.reshape(B, HW, A, n_attrs).transpose(0, 2, 3, 1)
                  .reshape(B * A, n_attrs, HW))
    assert out_std.shape == (B, HW * A, n_attrs)
    assert out_nat.shape == (B * A, n_attrs, HW)
    assert jnp.allclose(out_std, ref, atol=1e-5, rtol=1e-5)
    assert jnp.allclose(out_nat, ref_nat, atol=1e-5, rtol=1e-5)

    # Config 2: ragged spatial grid (G=13 -> HW=169, not a multiple of 128).
    B2, G2, inp_dim2 = 2, 13, 416
    x2 = jax.random.normal(k2, (B2, A * n_attrs, G2, G2), dtype=jnp.float32)
    out2 = detection_layer(x2, anchors, inp_dim2, num_classes,
                           native_layout=False)
    out2 = jax.block_until_ready(out2)
    ref2 = _reference(x2, anchors, inp_dim2, num_classes)
    assert jnp.allclose(out2, ref2, atol=1e-5, rtol=1e-5)

    # Config 3: bf16 input + bf16 output on the ragged grid.
    x3 = x2.astype(jnp.bfloat16)
    out3 = detection_layer(x3, anchors, inp_dim2, num_classes,
                           native_layout=False, out_dtype=jnp.bfloat16)
    out3 = jax.block_until_ready(out3)
    ref3 = _reference(x3, anchors, inp_dim2, num_classes)
    assert jnp.allclose(out3.astype(jnp.float32), ref3, atol=5e-2, rtol=2e-2)

    print("KERNEL_OK")
</pallas_src>

<mosaic_0001>
module attributes {stable_mosaic.version = 11 : i64} {
  func.func @_detection_kernel(%arg0: i32, %arg1: i32, %arg2: memref<3x8x256xf32, #tpu.memory_space<vmem>>, %arg3: memref<3x8x256xf32, #tpu.memory_space<vmem>>) attributes {dimension_semantics = [#tpu.dimension_semantics<parallel>, #tpu.dimension_semantics<parallel>], iteration_bounds = array<i64: 2, 1>, scalar_prefetch = 0 : i64, scratch_operands = 0 : i64, tpu.core_type = #tpu.core_type<tc>, window_params = [{transform_indices = @transform_0, window_bounds = array<i64: 3, 8, 256>}, {transform_indices = @transform_1, window_bounds = array<i64: 3, 8, 256>}]} {
    %c0 = arith.constant 0 : index
    %c0_0 = arith.constant 0 : index
    %c0_1 = arith.constant 0 : index
    %0 = vector.load %arg2[%c0, %c0_0, %c0_1] : memref<3x8x256xf32, #tpu.memory_space<vmem>>, vector<3x8x256xf32>
    %1 = tpu.iota {dimensions = array<i32: 1>} : vector<3x8x256xi32>
    %2 = tpu.iota {dimensions = array<i32: 2>} : vector<3x8x256xi32>
    %c256_i32 = arith.constant 256 : i32
    %3 = arith.muli %arg1, %c256_i32 : i32
    %4 = vector.broadcast %3 : i32 to vector<3x8x256xi32>
    %5 = arith.addi %2, %4 : vector<3x8x256xi32>
    %6 = arith.sitofp %5 : vector<3x8x256xi32> to vector<3x8x256xf32>
    %cst = arith.constant 5.000000e-01 : f32
    %7 = vector.broadcast %cst : f32 to vector<3x8x256xf32>
    %8 = arith.addf %6, %7 : vector<3x8x256xf32>
    %cst_2 = arith.constant 6.250000e-02 : f32
    %9 = vector.broadcast %cst_2 : f32 to vector<3x8x256xf32>
    %10 = arith.mulf %8, %9 : vector<3x8x256xf32>
    %11 = math.floor %10 : vector<3x8x256xf32>
    %cst_3 = arith.constant 1.600000e+01 : f32
    %12 = vector.broadcast %cst_3 : f32 to vector<3x8x256xf32>
    %13 = arith.mulf %11, %12 : vector<3x8x256xf32>
    %14 = arith.subf %6, %13 : vector<3x8x256xf32>
    %c0_i32 = arith.constant 0 : i32
    %15 = vector.broadcast %c0_i32 : i32 to vector<3x8x256xi32>
    %16 = arith.cmpi eq, %1, %15 : vector<3x8x256xi32>
    %17 = arith.select %16, %14, %11 : vector<3x8x256xi1>, vector<3x8x256xf32>
    %18 = tpu.iota {dimensions = array<i32: 0>} : vector<3x8xi32>
    %c3_i32 = arith.constant 3 : i32
    %19 = arith.muli %arg0, %c3_i32 : i32
    %20 = vector.broadcast %19 : i32 to vector<3x8xi32>
    %21 = arith.addi %18, %20 : vector<3x8xi32>
    %22 = arith.sitofp %21 : vector<3x8xi32> to vector<3x8xf32>
    %cst_4 = arith.constant 5.000000e-01 : f32
    %23 = vector.broadcast %cst_4 : f32 to vector<3x8xf32>
    %24 = arith.addf %22, %23 : vector<3x8xf32>
    %cst_5 = arith.constant 0.333333343 : f32
    %25 = vector.broadcast %cst_5 : f32 to vector<3x8xf32>
    %26 = arith.mulf %24, %25 : vector<3x8xf32>
    %27 = math.floor %26 : vector<3x8xf32>
    %cst_6 = arith.constant 3.000000e+00 : f32
    %28 = vector.broadcast %cst_6 : f32 to vector<3x8xf32>
    %29 = arith.mulf %27, %28 : vector<3x8xf32>
    %30 = arith.subf %22, %29 : vector<3x8xf32>
    %31 = tpu.iota {dimensions = array<i32: 1>} : vector<3x8xi32>
    %cst_7 = arith.constant 0.000000e+00 : f32
    %32 = vector.broadcast %cst_7 : f32 to vector<3x8xf32>
    %cst_8 = arith.constant 0.000000e+00 : f32
    %33 = vector.broadcast %cst_8 : f32 to vector<3x8xf32>
    %34 = arith.cmpf oeq, %30, %33 : vector<3x8xf32>
    %c2_i32 = arith.constant 2 : i32
    %35 = vector.broadcast %c2_i32 : i32 to vector<3x8xi32>
    %36 = arith.cmpi eq, %31, %35 : vector<3x8xi32>
    %37 = arith.andi %34, %36 : vector<3x8xi1>
    %cst_9 = arith.constant 1.000000e+01 : f32
    %38 = vector.broadcast %cst_9 : f32 to vector<3x8xf32>
    %39 = arith.select %37, %38, %32 : vector<3x8xi1>, vector<3x8xf32>
    %c3_i32_10 = arith.constant 3 : i32
    %40 = vector.broadcast %c3_i32_10 : i32 to vector<3x8xi32>
    %41 = arith.cmpi eq, %31, %40 : vector<3x8xi32>
    %42 = arith.andi %34, %41 : vector<3x8xi1>
    %cst_11 = arith.constant 1.300000e+01 : f32
    %43 = vector.broadcast %cst_11 : f32 to vector<3x8xf32>
    %44 = arith.select %42, %43, %39 : vector<3x8xi1>, vector<3x8xf32>
    %cst_12 = arith.constant 1.000000e+00 : f32
    %45 = vector.broadcast %cst_12 : f32 to vector<3x8xf32>
    %46 = arith.cmpf oeq, %30, %45 : vector<3x8xf32>
    %c2_i32_13 = arith.constant 2 : i32
    %47 = vector.broadcast %c2_i32_13 : i32 to vector<3x8xi32>
    %48 = arith.cmpi eq, %31, %47 : vector<3x8xi32>
    %49 = arith.andi %46, %48 : vector<3x8xi1>
    %cst_14 = arith.constant 1.600000e+01 : f32
    %50 = vector.broadcast %cst_14 : f32 to vector<3x8xf32>
    %51 = arith.select %49, %50, %44 : vector<3x8xi1>, vector<3x8xf32>
    %c3_i32_15 = arith.constant 3 : i32
    %52 = vector.broadcast %c3_i32_15 : i32 to vector<3x8xi32>
    %53 = arith.cmpi eq, %31, %52 : vector<3x8xi32>
    %54 = arith.andi %46, %53 : vector<3x8xi1>
    %cst_16 = arith.constant 3.000000e+01 : f32
    %55 = vector.broadcast %cst_16 : f32 to vector<3x8xf32>
    %56 = arith.select %54, %55, %51 : vector<3x8xi1>, vector<3x8xf32>
    %cst_17 = arith.constant 2.000000e+00 : f32
    %57 = vector.broadcast %cst_17 : f32 to vector<3x8xf32>
    %58 = arith.cmpf oeq, %30, %57 : vector<3x8xf32>
    %c2_i32_18 = arith.constant 2 : i32
    %59 = vector.broadcast %c2_i32_18 : i32 to vector<3x8xi32>
    %60 = arith.cmpi eq, %31, %59 : vector<3x8xi32>
    %61 = arith.andi %58, %60 : vector<3x8xi1>
    %cst_19 = arith.constant 3.300000e+01 : f32
    %62 = vector.broadcast %cst_19 : f32 to vector<3x8xf32>
    %63 = arith.select %61, %62, %56 : vector<3x8xi1>, vector<3x8xf32>
    %c3_i32_20 = arith.constant 3 : i32
    %64 = vector.broadcast %c3_i32_20 : i32 to vector<3x8xi32>
    %65 = arith.cmpi eq, %31, %64 : vector<3x8xi32>
    %66 = arith.andi %58, %65 : vector<3x8xi1>
    %cst_21 = arith.constant 2.300000e+01 : f32
    %67 = vector.broadcast %cst_21 : f32 to vector<3x8xf32>
    %68 = arith.select %66, %67, %63 : vector<3x8xi1>, vector<3x8xf32>
    %69 = vector.shape_cast %68 : vector<3x8xf32> to vector<3x8x1xf32>
    %70 = arith.negf %0 : vector<3x8x256xf32>
    %71 = math.exp %70 : vector<3x8x256xf32>
    %cst_22 = arith.constant 1.000000e+00 : f32
    %72 = vector.broadcast %cst_22 : f32 to vector<3x8x256xf32>
    %73 = arith.addf %72, %71 : vector<3x8x256xf32>
    %74 = arith.divf %72, %73 : vector<3x8x256xf32>
    %75 = arith.addf %74, %17 : vector<3x8x256xf32>
    %cst_23 = arith.constant 8.000000e+00 : f32
    %76 = vector.broadcast %cst_23 : f32 to vector<3x8x256xf32>
    %77 = arith.mulf %75, %76 : vector<3x8x256xf32>
    %78 = math.exp %0 : vector<3x8x256xf32>
    %79 = vector.broadcast %69 : vector<3x8x1xf32> to vector<3x8x256xf32>
    %80 = arith.mulf %78, %79 : vector<3x8x256xf32>
    %c2_i32_24 = arith.constant 2 : i32
    %81 = vector.broadcast %c2_i32_24 : i32 to vector<3x8x256xi32>
    %82 = arith.cmpi slt, %1, %81 : vector<3x8x256xi32>
    %c4_i32 = arith.constant 4 : i32
    %83 = vector.broadcast %c4_i32 : i32 to vector<3x8x256xi32>
    %84 = arith.cmpi slt, %1, %83 : vector<3x8x256xi32>
    %85 = arith.select %84, %80, %74 : vector<3x8x256xi1>, vector<3x8x256xf32>
    %86 = arith.select %82, %77, %85 : vector<3x8x256xi1>, vector<3x8x256xf32>
    %c0_25 = arith.constant 0 : index
    %c0_26 = arith.constant 0 : index
    %c0_27 = arith.constant 0 : index
    %87 = vector.load %arg3[%c0_25, %c0_26, %c0_27] : memref<3x8x256xf32, #tpu.memory_space<vmem>>, vector<3x8x256xf32>
    tpu.vector_store %arg3[%c0_25, %c0_26, %c0_27], %86 {strides = array<i32>} : memref<3x8x256xf32, #tpu.memory_space<vmem>>, vector<3x8x256xf32>,
    return
  }
  func.func @transform_0(%arg0: i32, %arg1: i32) -> (i32, i32, i32) {
    %c0_i32 = arith.constant 0 : i32
    %c0_i32_0 = arith.constant 0 : i32
    return %arg0, %c0_i32, %arg1 : i32, i32, i32
  }
  func.func @transform_1(%arg0: i32, %arg1: i32) -> (i32, i32, i32) {
    %c0_i32 = arith.constant 0 : i32
    %c0_i32_0 = arith.constant 0 : i32
    return %arg0, %c0_i32, %arg1 : i32, i32, i32
  }
}

</mosaic_0001>

<llo_original>
// kernel: tpu_custom_call.1
$region0: #{tpu_custom_call.1}
  #allocation0 [shape = 'u32[]', space=smem, size = 0x4, offset = 0x4, fixed_abs, tag = 'smem constant byte address 0x4 - core index']
  #allocation1 [shape = 'u32[72,128]{1,0:T(1,128)}', space=vmem, size = 0x9000, scoped, tag = 'internal scratch']
  %s0 = inlined_call_operand.hbm [shape: f32[6,8,256], index: 0, kind: input, shape index: {}]
  %s1 = inlined_call_operand.hbm [shape: f32[6,8,256], index: 1, kind: output, shape index: {}]
  %s2 = sld [smem:[#allocation0]]
  $region41: #{tpu_custom_call.1} parent=0
    _
  %s4 = ssub.s32 1, %s2
  %s5 = scalar_select 0, %s4, %s2
  $region1: #{tpu_custom_call.1} parent=0
    #allocation2 [shape = 'u8[49152]{0}', space=vmem, size = 0xc000, scoped, tag = 'input window, operand 0']
    #allocation3 [shape = 's32[2]{0}', space=sflag, size = 0x8, scoped, tag = 'scoped memory for tpu_custom_call.1']
    #allocation4 [shape = 's32[2]{0}', space=sflag, size = 0x8, scoped, tag = 'scoped memory for tpu_custom_call.1']
    #allocation5 [shape = 'u8[49152]{0}', space=vmem, size = 0xc000, scoped, tag = 'output window, operand 0']
    %6 = vsyncpa [#allocation3], 0
    %s7 = scalar_lea.sflag [#allocation3], 1
    %8 = vsyncpa %s7, 0
    %9 = vsyncpa [#allocation4], 0
    %s10 = scalar_lea.sflag [#allocation4], 1
    %11 = vsyncpa %s10, 0
    loop: start=0, step=1, limit=4
    $region2: #{tpu_custom_call.1} parent=1 // loop_pre_header
      _
    $region3: #{tpu_custom_call.1} parent=1 // loop_header
      %s13 = sphi 0, %s17
      %p14 = scmp.ge.s32.totalorder %s13, 4
      %s20 = sphi 0, %s32
      %s21 = sphi 0, %s28
      %s22 = sphi 0, %s20
      %s23 = sphi 0, %s21
      %s24 = sphi 0, %s22
      %s25 = sphi 0, %s23
      %s37 = sphi 0, %s39
      %s40 = sphi 0, %s37
      %s41 = sphi 0, %s40
      %s57 = sphi 0, %s41
      %s65 = sphi 0, %s67
      %s68 = sphi 0, %s65
      %s69 = sphi 0, %s68
      %s85 = sphi 0, %s69
    $region4: #{tpu_custom_call.1} parent=1 // loop_header_branch
      %16 = sbr.rel (%p14) target = $region8
    $region5: #{tpu_custom_call.1} parent=1 // loop_body
      %s18 = ssub.s32 %s13, 1
      %s19 = ssub.s32 %s13, 2
      %s26 = sadd.s32 1, %s21
      %p27 = scmp.ge.s32.totalorder %s26, 1
      %s28 = scalar_select %p27, 0, %s26
      %s29 = sadd.s32 1, %s20
      %s30 = scalar_select %p27, %s29, %s20
      %p31 = scmp.ge.s32.totalorder %s30, 2
      %s32 = scalar_select %p31, 0, %s30
      %s33 = ssub.s32 %s20, %s32
      %s34 = ssub.s32 %s21, %s28
      %s35 = sor.u32 %s33, %s34
      %p36 = scmp.eq.s32.totalorder %s35, 0
      %s38 = sadd.s32 %s37, 1
      %s39 = scalar_select %p36, %s37, %s38
      %p42 = pneg %p36
      %p43 = scmp.eq.s32.totalorder %s13, 1
      %p44 = por %p42, %p43
      %p45 = scmp.ne.s32.totalorder %s37, %s40
      %p46 = scmp.eq.s32.totalorder %s13, 0
      %p47 = por %p45, %p46
      %p48 = scmp.ne.s32.totalorder %s37, %s40
      %p49 = scmp.eq.s32.totalorder %s18, 1
      %p50 = por %p48, %p49
      %p51 = scmp.ne.s32.totalorder %s40, %s41
      %p52 = scmp.eq.s32.totalorder %s18, 0
      %p53 = por %p51, %p52
      %p54 = scmp.ne.s32.totalorder %s40, %s41
      %p55 = scmp.eq.s32.totalorder %s19, 1
      %p56 = por %p54, %p55
      %p58 = scmp.ne.s32.totalorder %s41, %s57
      %p59 = scmp.eq.s32.totalorder %s19, 0
      %p60 = por %p58, %p59
      %s61 = ssub.s32 %s20, %s32
      %s62 = ssub.s32 %s21, %s28
      %s63 = sor.u32 %s61, %s62
      %p64 = scmp.eq.s32.totalorder %s63, 0
      %s66 = sadd.s32 %s65, 1
      %s67 = scalar_select %p64, %s65, %s66
      %p70 = pneg %p64
      %p71 = scmp.eq.s32.totalorder %s13, 1
      %p72 = por %p70, %p71
      %p73 = scmp.ne.s32.totalorder %s65, %s68
      %p74 = scmp.eq.s32.totalorder %s13, 0
      %p75 = por %p73, %p74
      %p76 = scmp.ne.s32.totalorder %s65, %s68
      %p77 = scmp.eq.s32.totalorder %s18, 1
      %p78 = por %p76, %p77
      %p79 = scmp.ne.s32.totalorder %s68, %s69
      %p80 = scmp.eq.s32.totalorder %s18, 0
      %p81 = por %p79, %p80
      %p82 = scmp.ne.s32.totalorder %s68, %s69
      %p83 = scmp.eq.s32.totalorder %s19, 1
      %p84 = por %p82, %p83
      %p86 = scmp.ne.s32.totalorder %s69, %s85
      %p87 = scmp.eq.s32.totalorder %s19, 0
      %p88 = por %p86, %p87
      %p89 = scmp.le.s32.totalorder 1, %s13
      %p90 = scmp.lt.s32.totalorder %s13, 3
      %p91 = pnand %p89, %p90
      %p92 = pneg %p91
      // Predicated region
      $region9: #{tpu_custom_call.1} parent=5 // pred_check
        _
      $region10: #{tpu_custom_call.1} parent=5 // pred_check_branch
        %94 = sbr.rel (%p91) target = $region12
      $region11: #{tpu_custom_call.1} parent=5 // pred_region
        %s95 = ssub.s32 %s13, 1
      $region12: #{tpu_custom_call.1} parent=5 // pred_fallthru
        _
      %p96 = scmp.lt.s32.totalorder %s13, 2
      // Predicated region
      $region13: #{tpu_custom_call.1} parent=5 // pred_check
        %p97 = pneg %p96
      $region14: #{tpu_custom_call.1} parent=5 // pred_check_branch
        %99 = sbr.rel (%p97) target = $region16
      $region15: #{tpu_custom_call.1} parent=5 // pred_region
        // Predicated region
        $region17: #{tpu_custom_call.1} parent=15 // pred_check
          %p100 = pneg %p47
        $region18: #{tpu_custom_call.1} parent=15 // pred_check_branch
          %102 = sbr.rel (%p100) target = $region20
        $region19: #{tpu_custom_call.1} parent=15 // pred_region
          %s103 = sand.u32 %s37, 1
          %s104 = scalar_lea.sflag [#allocation3], %s103
          %s105 = sand.u32 %s37, 1
          %s106 = smul.addr %s105, 48
          %s107 = scalar_lea.vmem [#allocation2], %s106
          %s108 = smul.u32 3, %s20
          %s109 = smul.u32 2, %s21
          %111 = vsyncadd %s104, 0
          %s112 = smul.addr %s108, 2
          %s113 = sadd.s32 %s109, %s112
          %s114 = smul.addr %s113, 8
          %s115 = scalar_lea.hbm %s0, %s114
          %s116 = sshll.u32 %s115, 4
          %s117 = int_to_ptr.hbm [resolvable:$true] %s116
          %s118 = sshll.u32 %s107, 4
          %s119 = int_to_ptr.vmem [resolvable:$true] %s118
          %124 = dma.hbm_to_vmem [thread:$0]  %s117, 768, %s119, %s104, 256, 256, 16
        $region20: #{tpu_custom_call.1} parent=15 // pred_fallthru
          _
      $region16: #{tpu_custom_call.1} parent=5 // pred_fallthru
        _
      %p125 = scmp.le.s32.totalorder 1, %s13
      %p126 = scmp.lt.s32.totalorder %s13, 3
      %p127 = pnand %p125, %p126
      %p128 = pneg %p127
      // Predicated region
      $region21: #{tpu_custom_call.1} parent=5 // pred_check
        _
      $region22: #{tpu_custom_call.1} parent=5 // pred_check_branch
        %130 = sbr.rel (%p127) target = $region24
      $region23: #{tpu_custom_call.1} parent=5 // pred_region
        %s131 = ssub.s32 %s13, 1
        %s132 = sand.u32 %s40, 1
        %s133 = scalar_lea.sflag [#allocation3], %s132
        %s134 = sand.u32 %s40, 1
        %s135 = smul.addr %s134, 48
        %s136 = scalar_lea.vmem [#allocation2], %s135
        // Predicated region
        $region25: #{tpu_custom_call.1} parent=23 // pred_check
          %p137 = pneg %p53
        $region26: #{tpu_custom_call.1} parent=23 // pred_check_branch
          %139 = sbr.rel (%p137) target = $region28
        $region27: #{tpu_custom_call.1} parent=23 // pred_region
          %141 = dma.done %s133, 768
        $region28: #{tpu_custom_call.1} parent=23 // pred_fallthru
          _
        %s142 = sand.u32 %s40, 1
        %s143 = scalar_lea.sflag [#allocation3], %s142
        %s144 = sand.u32 %s40, 1
        %s145 = smul.addr %s144, 48
        %s146 = scalar_lea.vmem [#allocation2], %s145
        %p147 = pneg %p53
        %p148 = pneg %p50
        %p149 = pneg %p81
        %p150 = pneg %p78
        %s151 = sand.u32 %s68, 1
        %s152 = scalar_lea.sflag [#allocation4], %s151
        %s153 = sand.u32 %s68, 1
        %s154 = smul.addr %s153, 48
        %s155 = scalar_lea.vmem [#allocation5], %s154
        %s156 = smul.u32 3, %s22
        %s157 = smul.u32 2, %s23
        %s158 = smul.u32 3, %s22
        %s159 = smul.u32 2, %s23
        %v160 = vld [vmem:[%s136] sm:$0xff]
        %v161 = vld [vmem:[%s136 + $0x8] sm:$0xff]
        %v162 = vld [vmem:[%s136 + $0x10] sm:$0xff]
        %v163 = vld [vmem:[%s136 + $0x18] sm:$0xff]
        %v164 = vld [vmem:[%s136 + $0x20] sm:$0xff]
        %v165 = vld [vmem:[%s136 + $0x28] sm:$0xff]
        %v166 = vlaneseq
        %v167 = vshrl.u32 %v166, 7
        %v168 = vlaneseq
        %v169 = vand.u32 %v168, 127
        %v170 = vadd.s32 %v169, 128
        %s171 = smul.u32 %s23, 256
        %v172 = vstv %s171
        %v173 = vadd.s32 %v169, %v172
        %v174 = vadd.s32 %v170, %v172
        %v175 = vcvt.s32.f32 %v173
        %v176 = vcvt.s32.f32 %v174
        %v177 = vadd.f32 %v175, 0.5
        %v178 = vadd.f32 %v176, 0.5
        %v179 = vmul.f32 %v177, 0.0625
        %v180 = vmul.f32 %v178, 0.0625
        %v181 = vfloor.f32 %v179
        %v182 = vfloor.f32 %v180
        %v183 = vmul.f32 %v181, 16.0
        %v184 = vmul.f32 %v182, 16.0
        %v185 = vsub.f32 %v175, %v183
        %v186 = vsub.f32 %v176, %v184
        %vm187 = vcmp.eq.s32.totalorder %v167, 0
        %v188 = vsel %vm187, %v185, %v181
        %v189 = vsel %vm187, %v186, %v182
        %s190 = smul.u32 %s22, 3
        %v191 = vstv %s190
        %v192 = vadd.s32 %v167, %v191
        %v193 = vcvt.s32.f32 %v192
        %v194 = vadd.f32 %v193, 0.5
        %v195 = vmul.f32 %v194, 0.33333334
        %v196 = vfloor.f32 %v195
        %v197 = vmul.f32 %v196, 3.0
        %v198 = vsub.f32 %v193, %v197
        %vm199 = vcmp.eq.f32.partialorder %v198, 0.0
        %vm200 = vcmp.eq.s32.totalorder %v169, 2
        %vm201 = vmand %vm199, %vm200
        %v202 = vsel %vm201, 10.0, 0.0
        %vm203 = vcmp.eq.s32.totalorder %v169, 3
        %vm204 = vmand %vm199, %vm203
        %v205 = vsel %vm204, 13.0, %v202
        %vm206 = vcmp.eq.f32.partialorder %v198, 1.0
        %vm207 = vmand %vm206, %vm200
        %v208 = vsel %vm207, 16.0, %v205
        %vm209 = vmand %vm206, %vm203
        %v210 = vsel %vm209, 30.0, %v208
        %vm211 = vcmp.eq.f32.partialorder %v198, 2.0
        %vm212 = vmand %vm211, %vm200
        %v213 = vsel %vm212, 33.0, %v210
        %vm214 = vmand %vm211, %vm203
        %v215 = vsel %vm214, 23.0, %v213
        %v216 = vperm.slane %v215, 0
        %v217 = vlaneseq
        %v218 = vshrl.u32 %v217, 7
        %220 = vset.pattern.permute.xlu0 %v218
        %221 = vperm.xlu0 %220, %v216
        %v222 = vpop.permute.xlu0 %221
        %v223 = vperm.slane %v215, 1
        %v224 = vlaneseq
        %v225 = vshrl.u32 %v224, 7
        %227 = vset.pattern.permute.xlu0 %v225
        %228 = vperm.xlu0 %227, %v223
        %v229 = vpop.permute.xlu0 %228
        %v230 = vperm.slane %v215, 2
        %v231 = vlaneseq
        %v232 = vshrl.u32 %v231, 7
        %234 = vset.pattern.permute.xlu0 %v232
        %235 = vperm.xlu0 %234, %v230
        %v236 = vpop.permute.xlu0 %235
        %v237 = vxor.u32 %v160, 2147483648
        %v238 = vxor.u32 %v161, 2147483648
        %v239 = vxor.u32 %v162, 2147483648
        %v240 = vxor.u32 %v163, 2147483648
        %v241 = vxor.u32 %v164, 2147483648
        %v242 = vxor.u32 %v165, 2147483648
        %v243 = vmul.f32 %v237, 1.442695
        %v244 = vpow.pop %v243
        %v245 = vmul.f32 %v238, 1.442695
        %v246 = vpow.pop %v245
        %v247 = vmul.f32 %v239, 1.442695
        %v248 = vpow.pop %v247
        %v249 = vmul.f32 %v240, 1.442695
        %v250 = vpow.pop %v249
        %v251 = vmul.f32 %v241, 1.442695
        %v252 = vpow.pop %v251
        %v253 = vmul.f32 %v242, 1.442695
        %v254 = vpow.pop %v253
        %v255 = vadd.f32 %v244, 1.0
        %v256 = vadd.f32 %v246, 1.0
        %v257 = vadd.f32 %v248, 1.0
        %v258 = vadd.f32 %v250, 1.0
        %v259 = vadd.f32 %v252, 1.0
        %v260 = vadd.f32 %v254, 1.0
        %v261 = vrcp.pop %v255
        %v262 = vmul.f32 %v255, %v261
        %v263 = vsub.f32 1.0, %v262
        %v264 = vmul.f32 %v261, %v263
        %v265 = vadd.f32 %v261, %v264
        %vm266 = vweird.f32 %v255
        %vm267 = vweird.f32 %v261
        %vm268 = vmor %vm266, %vm267
        %v269 = vsel %vm268, %v261, %v265
        %v270 = vand.u32 2147483647, %v255
        %vm271 = vcmp.eq.f32.partialorder %v270, 8.507059e+37
        %v272 = vand.u32 %v255, 2147483648
        %v273 = vor.u32 1.1754944e-38, %v272
        %v274 = vsel %vm271, %v273, %v269
        %v275 = vmul.f32 1.0, %v274
        %v276 = vrcp.pop %v256
        %v277 = vmul.f32 %v256, %v276
        %v278 = vsub.f32 1.0, %v277
        %v279 = vmul.f32 %v276, %v278
        %v280 = vadd.f32 %v276, %v279
        %vm281 = vweird.f32 %v256
        %vm282 = vweird.f32 %v276
        %vm283 = vmor %vm281, %vm282
        %v284 = vsel %vm283, %v276, %v280
        %v285 = vand.u32 2147483647, %v256
        %vm286 = vcmp.eq.f32.partialorder %v285, 8.507059e+37
        %v287 = vand.u32 %v256, 2147483648
        %v288 = vor.u32 1.1754944e-38, %v287
        %v289 = vsel %vm286, %v288, %v284
        %v290 = vmul.f32 1.0, %v289
        %v291 = vrcp.pop %v257
        %v292 = vmul.f32 %v257, %v291
        %v293 = vsub.f32 1.0, %v292
        %v294 = vmul.f32 %v291, %v293
        %v295 = vadd.f32 %v291, %v294
        %vm296 = vweird.f32 %v257
        %vm297 = vweird.f32 %v291
        %vm298 = vmor %vm296, %vm297
        %v299 = vsel %vm298, %v291, %v295
        %v300 = vand.u32 2147483647, %v257
        %vm301 = vcmp.eq.f32.partialorder %v300, 8.507059e+37
        %v302 = vand.u32 %v257, 2147483648
        %v303 = vor.u32 1.1754944e-38, %v302
        %v304 = vsel %vm301, %v303, %v299
        %v305 = vmul.f32 1.0, %v304
        %v306 = vrcp.pop %v258
        %v307 = vmul.f32 %v258, %v306
        %v308 = vsub.f32 1.0, %v307
        %v309 = vmul.f32 %v306, %v308
        %v310 = vadd.f32 %v306, %v309
        %vm311 = vweird.f32 %v258
        %vm312 = vweird.f32 %v306
        %vm313 = vmor %vm311, %vm312
        %v314 = vsel %vm313, %v306, %v310
        %v315 = vand.u32 2147483647, %v258
        %vm316 = vcmp.eq.f32.partialorder %v315, 8.507059e+37
        %v317 = vand.u32 %v258, 2147483648
        %v318 = vor.u32 1.1754944e-38, %v317
        %v319 = vsel %vm316, %v318, %v314
        %v320 = vmul.f32 1.0, %v319
        %v321 = vrcp.pop %v259
        %v322 = vmul.f32 %v259, %v321
        %v323 = vsub.f32 1.0, %v322
        %v324 = vmul.f32 %v321, %v323
        %v325 = vadd.f32 %v321, %v324
        %vm326 = vweird.f32 %v259
        %vm327 = vweird.f32 %v321
        %vm328 = vmor %vm326, %vm327
        %v329 = vsel %vm328, %v321, %v325
        %v330 = vand.u32 2147483647, %v259
        %vm331 = vcmp.eq.f32.partialorder %v330, 8.507059e+37
        %v332 = vand.u32 %v259, 2147483648
        %v333 = vor.u32 1.1754944e-38, %v332
        %v334 = vsel %vm331, %v333, %v329
        %v335 = vmul.f32 1.0, %v334
        %v336 = vrcp.pop %v260
        %v337 = vmul.f32 %v260, %v336
        %v338 = vsub.f32 1.0, %v337
        %v339 = vmul.f32 %v336, %v338
        %v340 = vadd.f32 %v336, %v339
        %vm341 = vweird.f32 %v260
        %vm342 = vweird.f32 %v336
        %vm343 = vmor %vm341, %vm342
        %v344 = vsel %vm343, %v336, %v340
        %v345 = vand.u32 2147483647, %v260
        %vm346 = vcmp.eq.f32.partialorder %v345, 8.507059e+37
        %v347 = vand.u32 %v260, 2147483648
        %v348 = vor.u32 1.1754944e-38, %v347
        %v349 = vsel %vm346, %v348, %v344
        %v350 = vmul.f32 1.0, %v349
        %v351 = vadd.f32 %v275, %v188
        %v352 = vadd.f32 %v290, %v189
        %v353 = vadd.f32 %v305, %v188
        %v354 = vadd.f32 %v320, %v189
        %v355 = vadd.f32 %v335, %v188
        %v356 = vadd.f32 %v350, %v189
        %v357 = vmul.f32 %v351, 8.0
        %v358 = vmul.f32 %v352, 8.0
        %v359 = vmul.f32 %v353, 8.0
        %v360 = vmul.f32 %v354, 8.0
        %v361 = vmul.f32 %v355, 8.0
        %v362 = vmul.f32 %v356, 8.0
        %v363 = vmul.f32 %v160, 1.442695
        %v364 = vpow.pop %v363
        %v365 = vmul.f32 %v161, 1.442695
        %v366 = vpow.pop %v365
        %v367 = vmul.f32 %v162, 1.442695
        %v368 = vpow.pop %v367
        %v369 = vmul.f32 %v163, 1.442695
        %v370 = vpow.pop %v369
        %v371 = vmul.f32 %v164, 1.442695
        %v372 = vpow.pop %v371
        %v373 = vmul.f32 %v165, 1.442695
        %v374 = vpow.pop %v373
        %v375 = vmul.f32 %v364, %v222
        %v376 = vmul.f32 %v366, %v222
        %v377 = vmul.f32 %v368, %v229
        %v378 = vmul.f32 %v370, %v229
        %v379 = vmul.f32 %v372, %v236
        %v380 = vmul.f32 %v374, %v236
        %vm381 = vcmp.lt.s32.totalorder %v167, 2
        %vm382 = vcmp.lt.s32.totalorder %v167, 4
        %v383 = vsel %vm382, %v375, %v275
        %v384 = vsel %vm382, %v376, %v290
        %v385 = vsel %vm382, %v377, %v305
        %v386 = vsel %vm382, %v378, %v320
        %v387 = vsel %vm382, %v379, %v335
        %v388 = vsel %vm382, %v380, %v350
        %v389 = vsel %vm381, %v357, %v383
        %v390 = vsel %vm381, %v358, %v384
        %v391 = vsel %vm381, %v359, %v385
        %v392 = vsel %vm381, %v360, %v386
        %v393 = vsel %vm381, %v361, %v387
        %v394 = vsel %vm381, %v362, %v388
        %395 = vst [vmem:[%s155] sm:$0xff] %v389
        %396 = vst [vmem:[%s155 + $0x8] sm:$0xff] %v390
        %397 = vst [vmem:[%s155 + $0x10] sm:$0xff] %v391
        %398 = vst [vmem:[%s155 + $0x18] sm:$0xff] %v392
        %399 = vst [vmem:[%s155 + $0x20] sm:$0xff] %v393
        %400 = vst [vmem:[%s155 + $0x28] sm:$0xff] %v394
        %s401 = sand.u32 %s68, 1
        %s402 = scalar_lea.sflag [#allocation4], %s401
        %s403 = sand.u32 %s68, 1
        %s404 = smul.addr %s403, 48
        %s405 = scalar_lea.vmem [#allocation5], %s404
        // Predicated region
        $region29: #{tpu_custom_call.1} parent=23 // pred_check
          %p406 = pneg %p78
        $region30: #{tpu_custom_call.1} parent=23 // pred_check_branch
          %408 = sbr.rel (%p406) target = $region32
        $region31: #{tpu_custom_call.1} parent=23 // pred_region
          %s409 = smul.u32 3, %s22
          %s410 = smul.u32 2, %s23
          %412 = vsyncadd %s402, 0
          %s413 = smul.addr %s409, 2
          %s414 = sadd.s32 %s410, %s413
          %s415 = smul.addr %s414, 8
          %s416 = scalar_lea.hbm %s1, %s415
          %s417 = sshll.u32 %s405, 4
          %s418 = int_to_ptr.vmem [resolvable:$true] %s417
          %s419 = sshll.u32 %s416, 4
          %s420 = int_to_ptr.hbm [resolvable:$true] %s419
          %425 = dma.vmem_to_hbm [thread:$0]  %s418, 768, %s420, %s402, 256, 256, 16
        $region32: #{tpu_custom_call.1} parent=23 // pred_fallthru
          _
      $region24: #{tpu_custom_call.1} parent=5 // pred_fallthru
        _
      %p426 = scmp.le.s32.totalorder 2, %s13
      // Predicated region
      $region33: #{tpu_custom_call.1} parent=5 // pred_check
        %p427 = pneg %p426
      $region34: #{tpu_custom_call.1} parent=5 // pred_check_branch
        %429 = sbr.rel (%p427) target = $region36
      $region35: #{tpu_custom_call.1} parent=5 // pred_region
        %s430 = ssub.s32 %s13, 2
        // Predicated region
        $region37: #{tpu_custom_call.1} parent=35 // pred_check
          %p431 = pneg %p84
        $region38: #{tpu_custom_call.1} parent=35 // pred_check_branch
          %433 = sbr.rel (%p431) target = $region40
        $region39: #{tpu_custom_call.1} parent=35 // pred_region
          %s434 = sand.u32 %s69, 1
          %s435 = scalar_lea.sflag [#allocation4], %s434
          %s436 = sand.u32 %s69, 1
          %s437 = smul.addr %s436, 48
          %s438 = scalar_lea.vmem [#allocation5], %s437
          %440 = dma.done %s435, 768
        $region40: #{tpu_custom_call.1} parent=35 // pred_fallthru
          _
      $region36: #{tpu_custom_call.1} parent=5 // pred_fallthru
        _
    $region6: #{tpu_custom_call.1} parent=1 // loop_footer
      %s17 = sadd.s32 1, %s13
    $region7: #{tpu_custom_call.1} parent=1 // loop_footer_branch
      %12 = sbr.rel target = $region3
    $region8: #{tpu_custom_call.1} parent=1 // loop_exit
      _
    %441 = vsyncpa [#allocation3], 1
    %s442 = scalar_lea.sflag [#allocation3], 1
    %443 = vsyncpa %s442, 1
    %444 = vsyncpa [#allocation4], 1
    %s445 = scalar_lea.sflag [#allocation4], 1
    %446 = vsyncpa %s445, 1

</llo_original>
